<compile_context>
chip_gen: v5e
topology: v5e:2x2
jax: 0.10.0
libtpu: 0.0.40
codegen_flags: <defaults>
</compile_context>

<pallas_src>
import jax
import jax.numpy as jnp
from jax import lax
from jax.experimental import pallas as pl
from jax.experimental.pallas import tpu as pltpu


def _round_up(x, m):
    return ((x + m - 1) // m) * m


def _as_row(b):
    # Defensive: accept 1-D biases as well as (1, n).
    return b.reshape(1, -1) if b.ndim == 1 else b


def _num_tensorcores_per_chip():
    # v7x has 2 TensorCores per chip (megacore sharding via "parallel" grid
    # axes); v5e/v6e have 1, where splitting the grid only adds step overhead.
    try:
        kind = jax.devices()[0].device_kind.lower()
    except Exception:
        return 1
    return 2 if "v7" in kind else 1


def mlp_kernel(x_ref, w1_ref, b1_ref, w2_ref, b2_ref, w3t_ref, b3t_ref, ot_ref):
    # Fused: Linear -> ReLU -> (dropout=id) -> Linear -> ReLU -> (dropout=id) -> Linear
    x = x_ref[...]
    h1 = jnp.dot(x, w1_ref[...], preferred_element_type=jnp.float32) + b1_ref[...]
    h1 = jnp.maximum(h1, 0.0)
    h2 = jnp.dot(h1.astype(w2_ref.dtype), w2_ref[...],
                 preferred_element_type=jnp.float32) + b2_ref[...]
    h2 = jnp.maximum(h2, 0.0)
    # Final layer computed transposed: (n_pad, tb) = w3t (n_pad, h2) . h2^T.
    # Batch lands on the lane axis, so the store is a full-width `vst` even
    # though num_classes is tiny.
    out_t = lax.dot_general(
        w3t_ref[...], h2.astype(w3t_ref.dtype),
        dimension_numbers=(((1,), (1,)), ((), ())),
        preferred_element_type=jnp.float32,
    ) + b3t_ref[...]
    ot_ref[...] = out_t.astype(ot_ref.dtype)


def isotype_predictor_mlp(x, params, *, tile_b=2048, force_pallas=False,
                          compute_dtype=None, small_batch_threshold=1024):
    """x: (B, input_dim) f32.  params: dict of w1,b1,w2,b2,w3,b3 (W: (in, out))."""
    w1, b1 = params["w1"], _as_row(params["b1"])
    w2, b2 = params["w2"], _as_row(params["b2"])
    w3, b3 = params["w3"], _as_row(params["b3"])
    B, d_in = x.shape
    h1 = w1.shape[1]
    h2 = w2.shape[1]
    n_cls = w3.shape[1]
    out_dtype = x.dtype

    # Small-batch fallback: the whole problem is a few hundred KiB at most;
    # pallas_call fixed cost dominates, a plain XLA fusion is faster.
    if B < small_batch_threshold and not force_pallas:
        a1 = jnp.maximum(x @ w1 + b1, 0.0)
        a2 = jnp.maximum(a1 @ w2 + b2, 0.0)
        return a2 @ w3 + b3

    # ---- transposed, sublane-padded final layer (pad classes only to 8).
    n_pad = _round_up(max(n_cls, 8), 8)
    w3t = w3.T                                    # (n_cls, h2)
    b3t = b3.T                                    # (n_cls, 1)
    if n_pad != n_cls:
        w3t = jnp.pad(w3t, ((0, n_pad - n_cls), (0, 0)))
        b3t = jnp.pad(b3t, ((0, n_pad - n_cls), (0, 0)))

    # ---- batch tiling: one large tile per grid step, no wrapper-side padding
    # (partial last block handled by Pallas).  v7x only: cap so the grid has
    # ~4 steps per TensorCore for pipeline depth.
    if B <= tile_b:
        tb = B
    else:
        tb = _round_up(tile_b, 128)
        n_tc = _num_tensorcores_per_chip()
        if n_tc > 1:
            want = _round_up(pl.cdiv(B, 4 * n_tc), 128)
            tb = min(tb, max(512, want))
        tb = min(tb, B)
    grid = (pl.cdiv(B, tb),)

    # Optional reduced-precision x/weight stream (accumulation stays f32).
    x_c, w1_c, w2_c, w3t_c = x, w1, w2, w3t
    if compute_dtype is not None:
        x_c = x.astype(compute_dtype)
        w1_c = w1.astype(compute_dtype)
        w2_c = w2.astype(compute_dtype)
        w3t_c = w3t.astype(compute_dtype)

    x_item = jnp.dtype(x_c.dtype).itemsize
    w_item = jnp.dtype(w1_c.dtype).itemsize
    o_item = jnp.dtype(out_dtype).itemsize
    cost = pl.CostEstimate(
        flops=2 * B * (d_in * h1 + h1 * h2 + h2 * n_pad),
        transcendentals=0,
        bytes_accessed=(
            B * d_in * x_item                      # x read
            + B * n_pad * o_item                   # transposed 8-row output
            + (d_in * h1 + h1 * h2 + n_pad * h2) * w_item
            + (h1 + h2 + n_pad) * 4                # f32 biases
        ),
    )

    const_spec = lambda shape: pl.BlockSpec(shape, lambda i: (0, 0))

    out_t = pl.pallas_call(
        mlp_kernel,
        out_shape=jax.ShapeDtypeStruct((n_pad, B), out_dtype),
        grid_spec=pltpu.PrefetchScalarGridSpec(
            num_scalar_prefetch=0,
            grid=grid,
            in_specs=[
                pl.BlockSpec((tb, d_in), lambda i: (i, 0)),   # x tile
                const_spec((d_in, h1)),                        # w1
                const_spec((1, h1)),                           # b1
                const_spec((h1, h2)),                          # w2
                const_spec((1, h2)),                           # b2
                const_spec((n_pad, h2)),                       # w3^T (sublane-padded)
                const_spec((n_pad, 1)),                        # b3^T (sublane-padded)
            ],
            out_specs=pl.BlockSpec((n_pad, tb), lambda i: (0, i)),
        ),
        compiler_params=pltpu.CompilerParams(
            dimension_semantics=("parallel",),
        ),
        cost_estimate=cost,
    )(x_c, w1_c, b1, w2_c, b2, w3t_c, b3t)

    # Tiny (n_cls, B) -> (B, n_cls) fixup outside the kernel.
    return out_t[:n_cls, :].T


def init_params(key, input_dim, hidden_dim1, hidden_dim2, num_classes):
    """Deterministic init mimicking nn.Linear default (uniform ±1/sqrt(fan_in))."""
    ks = jax.random.split(key, 6)

    def linear(kw, kb, fan_in, fan_out):
        bound = 1.0 / jnp.sqrt(fan_in)
        w = jax.random.uniform(kw, (fan_in, fan_out), jnp.float32, -bound, bound)
        b = jax.random.uniform(kb, (1, fan_out), jnp.float32, -bound, bound)
        return w, b

    w1, b1 = linear(ks[0], ks[1], input_dim, hidden_dim1)
    w2, b2 = linear(ks[2], ks[3], hidden_dim1, hidden_dim2)
    w3, b3 = linear(ks[4], ks[5], hidden_dim2, num_classes)
    return {"w1": w1, "b1": b1, "w2": w2, "b2": b2, "w3": w3, "b3": b3}


def reference_mlp(x, p):
    h1 = jnp.maximum(x @ p["w1"] + p["b1"], 0.0)
    h2 = jnp.maximum(h1 @ p["w2"] + p["b2"], 0.0)
    return h2 @ p["w3"] + p["b3"]


if __name__ == "__main__":
    key = jax.random.PRNGKey(0)
    k_x, k_p, k_x2 = jax.random.split(key, 3)

    batch = 10            # ragged on purpose
    input_dim = 32
    hidden_dim1 = 64
    hidden_dim2 = 32
    num_classes = 5
    # dropout_rate = 0.1  (identity at inference)

    x = jax.random.normal(k_x, (batch, input_dim), jnp.float32)
    params = init_params(k_p, input_dim, hidden_dim1, hidden_dim2, num_classes)

    # Pallas path at a tiny ragged batch (bypass the small-batch fallback).
    out = isotype_predictor_mlp(x, params, force_pallas=True)
    out = jax.block_until_ready(out)
    ref = reference_mlp(x, params)
    assert out.shape == (batch, num_classes)
    assert jnp.allclose(out, ref, atol=1e-5, rtol=1e-5)

    # Multi-tile path with a partial last block (300 rows, 128-row tiles):
    # exercises the masked tail store and the lane-axis batch output.
    x2 = jax.random.normal(k_x2, (300, input_dim), jnp.float32)
    out2 = jax.block_until_ready(
        isotype_predictor_mlp(x2, params, tile_b=128, force_pallas=True))
    ref2 = reference_mlp(x2, params)
    assert out2.shape == (300, num_classes)
    assert jnp.allclose(out2, ref2, atol=1e-5, rtol=1e-5)

    print("KERNEL_OK")
</pallas_src>

<mosaic_0001>
module attributes {stable_mosaic.version = 11 : i64} {
  func.func @mlp_kernel(%arg0: i32, %arg1: memref<10x32xf32, #tpu.memory_space<vmem>>, %arg2: memref<32x64xf32, #tpu.memory_space<vmem>>, %arg3: memref<1x64xf32, #tpu.memory_space<vmem>>, %arg4: memref<64x32xf32, #tpu.memory_space<vmem>>, %arg5: memref<1x32xf32, #tpu.memory_space<vmem>>, %arg6: memref<8x32xf32, #tpu.memory_space<vmem>>, %arg7: memref<8x1xf32, #tpu.memory_space<vmem>>, %arg8: memref<8x10xf32, #tpu.memory_space<vmem>>) attributes {dimension_semantics = [#tpu.dimension_semantics<parallel>], iteration_bounds = array<i64: 1>, scalar_prefetch = 0 : i64, scratch_operands = 0 : i64, tpu.core_type = #tpu.core_type<tc>, window_params = [{transform_indices = @transform_0, window_bounds = array<i64: 10, 32>}, {pipeline_mode = #tpu.pipeline_mode<synchronous>, transform_indices = @transform_1, window_bounds = array<i64: 32, 64>}, {pipeline_mode = #tpu.pipeline_mode<synchronous>, transform_indices = @transform_2, window_bounds = array<i64: 1, 64>}, {pipeline_mode = #tpu.pipeline_mode<synchronous>, transform_indices = @transform_3, window_bounds = array<i64: 64, 32>}, {pipeline_mode = #tpu.pipeline_mode<synchronous>, transform_indices = @transform_4, window_bounds = array<i64: 1, 32>}, {pipeline_mode = #tpu.pipeline_mode<synchronous>, transform_indices = @transform_5, window_bounds = array<i64: 8, 32>}, {pipeline_mode = #tpu.pipeline_mode<synchronous>, transform_indices = @transform_6, window_bounds = array<i64: 8, 1>}, {transform_indices = @transform_7, window_bounds = array<i64: 8, 10>}]} {
    %c0 = arith.constant 0 : index
    %c0_0 = arith.constant 0 : index
    %0 = vector.load %arg1[%c0, %c0_0] : memref<10x32xf32, #tpu.memory_space<vmem>>, vector<10x32xf32>
    %c0_1 = arith.constant 0 : index
    %c0_2 = arith.constant 0 : index
    %1 = vector.load %arg2[%c0_1, %c0_2] : memref<32x64xf32, #tpu.memory_space<vmem>>, vector<32x64xf32>
    %cst = arith.constant dense<0.000000e+00> : vector<10x64xf32>
    %2 = tpu.matmul %0, %1, %cst {dimension_numbers = #tpu.dot_dimension_numbers<[1], [0], [0], [1], [0, 0, 1, 1], [], []>} : vector<10x32xf32>, vector<32x64xf32>, vector<10x64xf32> -> vector<10x64xf32>
    %c0_3 = arith.constant 0 : index
    %c0_4 = arith.constant 0 : index
    %3 = vector.load %arg3[%c0_3, %c0_4] : memref<1x64xf32, #tpu.memory_space<vmem>>, vector<1x64xf32>
    %4 = vector.broadcast %3 : vector<1x64xf32> to vector<10x64xf32>
    %5 = arith.addf %2, %4 : vector<10x64xf32>
    %cst_5 = arith.constant 0.000000e+00 : f32
    %6 = vector.broadcast %cst_5 : f32 to vector<10x64xf32>
    %7 = arith.maximumf %5, %6 : vector<10x64xf32>
    %c0_6 = arith.constant 0 : index
    %c0_7 = arith.constant 0 : index
    %8 = vector.load %arg4[%c0_6, %c0_7] : memref<64x32xf32, #tpu.memory_space<vmem>>, vector<64x32xf32>
    %cst_8 = arith.constant dense<0.000000e+00> : vector<10x32xf32>
    %9 = tpu.matmul %7, %8, %cst_8 {dimension_numbers = #tpu.dot_dimension_numbers<[1], [0], [0], [1], [0, 0, 1, 1], [], []>} : vector<10x64xf32>, vector<64x32xf32>, vector<10x32xf32> -> vector<10x32xf32>
    %c0_9 = arith.constant 0 : index
    %c0_10 = arith.constant 0 : index
    %10 = vector.load %arg5[%c0_9, %c0_10] : memref<1x32xf32, #tpu.memory_space<vmem>>, vector<1x32xf32>
    %11 = vector.broadcast %10 : vector<1x32xf32> to vector<10x32xf32>
    %12 = arith.addf %9, %11 : vector<10x32xf32>
    %cst_11 = arith.constant 0.000000e+00 : f32
    %13 = vector.broadcast %cst_11 : f32 to vector<10x32xf32>
    %14 = arith.maximumf %12, %13 : vector<10x32xf32>
    %c0_12 = arith.constant 0 : index
    %c0_13 = arith.constant 0 : index
    %15 = vector.load %arg6[%c0_12, %c0_13] : memref<8x32xf32, #tpu.memory_space<vmem>>, vector<8x32xf32>
    %cst_14 = arith.constant dense<0.000000e+00> : vector<8x10xf32>
    %16 = tpu.matmul %15, %14, %cst_14 {dimension_numbers = #tpu.dot_dimension_numbers<[1], [1], [0], [0], [0, 0, 1, 0], [], []>} : vector<8x32xf32>, vector<10x32xf32>, vector<8x10xf32> -> vector<8x10xf32>
    %c0_15 = arith.constant 0 : index
    %c0_16 = arith.constant 0 : index
    %17 = vector.load %arg7[%c0_15, %c0_16] : memref<8x1xf32, #tpu.memory_space<vmem>>, vector<8x1xf32>
    %18 = vector.broadcast %17 : vector<8x1xf32> to vector<8x10xf32>
    %19 = arith.addf %16, %18 : vector<8x10xf32>
    %c0_17 = arith.constant 0 : index
    %c0_18 = arith.constant 0 : index
    %20 = vector.load %arg8[%c0_17, %c0_18] : memref<8x10xf32, #tpu.memory_space<vmem>>, vector<8x10xf32>
    tpu.vector_store %arg8[%c0_17, %c0_18], %19 {strides = array<i32>} : memref<8x10xf32, #tpu.memory_space<vmem>>, vector<8x10xf32>,
    return
  }
  func.func @transform_0(%arg0: i32) -> (i32, i32) {
    %c0_i32 = arith.constant 0 : i32
    %c0_i32_0 = arith.constant 0 : i32
    return %arg0, %c0_i32 : i32, i32
  }
  func.func @transform_1(%arg0: i32) -> (i32, i32) {
    %c0_i32 = arith.constant 0 : i32
    %c0_i32_0 = arith.constant 0 : i32
    %c0_i32_1 = arith.constant 0 : i32
    return %c0_i32, %c0_i32_0 : i32, i32
  }
  func.func @transform_2(%arg0: i32) -> (i32, i32) {
    %c0_i32 = arith.constant 0 : i32
    %c0_i32_0 = arith.constant 0 : i32
    %c0_i32_1 = arith.constant 0 : i32
    return %c0_i32, %c0_i32_0 : i32, i32
  }
  func.func @transform_3(%arg0: i32) -> (i32, i32) {
    %c0_i32 = arith.constant 0 : i32
    %c0_i32_0 = arith.constant 0 : i32
    %c0_i32_1 = arith.constant 0 : i32
    return %c0_i32, %c0_i32_0 : i32, i32
  }
  func.func @transform_4(%arg0: i32) -> (i32, i32) {
    %c0_i32 = arith.constant 0 : i32
    %c0_i32_0 = arith.constant 0 : i32
    %c0_i32_1 = arith.constant 0 : i32
    return %c0_i32, %c0_i32_0 : i32, i32
  }
  func.func @transform_5(%arg0: i32) -> (i32, i32) {
    %c0_i32 = arith.constant 0 : i32
    %c0_i32_0 = arith.constant 0 : i32
    %c0_i32_1 = arith.constant 0 : i32
    return %c0_i32, %c0_i32_0 : i32, i32
  }
  func.func @transform_6(%arg0: i32) -> (i32, i32) {
    %c0_i32 = arith.constant 0 : i32
    %c0_i32_0 = arith.constant 0 : i32
    %c0_i32_1 = arith.constant 0 : i32
    return %c0_i32, %c0_i32_0 : i32, i32
  }
  func.func @transform_7(%arg0: i32) -> (i32, i32) {
    %c0_i32 = arith.constant 0 : i32
    %c0_i32_0 = arith.constant 0 : i32
    return %c0_i32, %arg0 : i32, i32
  }
}

</mosaic_0001>

<llo_original>
// kernel: tpu_custom_call.1
$region0: #{tpu_custom_call.1}
  #allocation0 [shape = 'u32[]', space=smem, size = 0x4, offset = 0x4, fixed_abs, tag = 'smem constant byte address 0x4 - core index']
  #allocation1 [shape = 'u32[72,128]{1,0:T(1,128)}', space=vmem, size = 0x9000, scoped, tag = 'internal scratch']
  %s0 = inlined_call_operand.vmem [shape: f32[10,32], index: 0, kind: input, shape index: {}]
  %s1 = inlined_call_operand.vmem [shape: f32[32,64], index: 1, kind: input, shape index: {}]
  %s2 = inlined_call_operand.vmem [shape: f32[1,64], index: 2, kind: input, shape index: {}]
  %s3 = inlined_call_operand.vmem [shape: f32[64,32], index: 3, kind: input, shape index: {}]
  %s4 = inlined_call_operand.vmem [shape: f32[1,32], index: 4, kind: input, shape index: {}]
  %s5 = inlined_call_operand.vmem [shape: f32[8,32], index: 5, kind: input, shape index: {}]
  %s6 = inlined_call_operand.vmem [shape: f32[8,1], index: 6, kind: input, shape index: {}]
  %s7 = inlined_call_operand.hbm [shape: f32[8,10], index: 7, kind: output, shape index: {}]
  %s8 = sld [smem:[#allocation0]]
  $region38: #{tpu_custom_call.1} parent=0
    _
  %s10 = ssub.s32 1, %s8
  %s11 = scalar_select 0, %s10, %s8
  $region1: #{tpu_custom_call.1} parent=0
    #allocation2 [shape = 'u8[4096]{0}', space=vmem, size = 0x1000, scoped, tag = 'output window, operand 0, single buffered']
    #allocation3 [shape = 's32[1]{0}', space=sflag, size = 0x4, scoped, tag = 'scoped memory for tpu_custom_call.1']
    %12 = vsyncpa [#allocation3], 0
    // Predicated region
    $region2: #{tpu_custom_call.1} parent=1 // pred_check
      _
    $region3: #{tpu_custom_call.1} parent=1 // pred_check_branch
      %14 = sbr.rel (0) target = $region5
    $region4: #{tpu_custom_call.1} parent=1 // pred_region
      _
    $region5: #{tpu_custom_call.1} parent=1 // pred_fallthru
      _
    // Predicated region
    $region6: #{tpu_custom_call.1} parent=1 // pred_check
      _
    $region7: #{tpu_custom_call.1} parent=1 // pred_check_branch
      %16 = sbr.rel (0) target = $region9
    $region8: #{tpu_custom_call.1} parent=1 // pred_region
      _
    $region9: #{tpu_custom_call.1} parent=1 // pred_fallthru
      _
    // Predicated region
    $region10: #{tpu_custom_call.1} parent=1 // pred_check
      _
    $region11: #{tpu_custom_call.1} parent=1 // pred_check_branch
      %18 = sbr.rel (0) target = $region13
    $region12: #{tpu_custom_call.1} parent=1 // pred_region
      _
    $region13: #{tpu_custom_call.1} parent=1 // pred_fallthru
      _
    // Predicated region
    $region14: #{tpu_custom_call.1} parent=1 // pred_check
      _
    $region15: #{tpu_custom_call.1} parent=1 // pred_check_branch
      %20 = sbr.rel (0) target = $region17
    $region16: #{tpu_custom_call.1} parent=1 // pred_region
      _
    $region17: #{tpu_custom_call.1} parent=1 // pred_fallthru
      _
    // Predicated region
    $region18: #{tpu_custom_call.1} parent=1 // pred_check
      _
    $region19: #{tpu_custom_call.1} parent=1 // pred_check_branch
      %22 = sbr.rel (0) target = $region21
    $region20: #{tpu_custom_call.1} parent=1 // pred_region
      _
    $region21: #{tpu_custom_call.1} parent=1 // pred_fallthru
      _
    // Predicated region
    $region22: #{tpu_custom_call.1} parent=1 // pred_check
      _
    $region23: #{tpu_custom_call.1} parent=1 // pred_check_branch
      %24 = sbr.rel (0) target = $region25
    $region24: #{tpu_custom_call.1} parent=1 // pred_region
      _
    $region25: #{tpu_custom_call.1} parent=1 // pred_fallthru
      _
    // Predicated region
    $region26: #{tpu_custom_call.1} parent=1 // pred_check
      _
    $region27: #{tpu_custom_call.1} parent=1 // pred_check_branch
      %26 = sbr.rel (0) target = $region29
    $region28: #{tpu_custom_call.1} parent=1 // pred_region
      _
    $region29: #{tpu_custom_call.1} parent=1 // pred_fallthru
      _
    %v27 = vld [vmem:[%s0] sm:$0xff]
    %v28 = vld [vmem:[%s0 + $0x8] sm:$0x3]
    %v29 = vld [vmem:[%s1] sm:$0xff]
    %v30 = vld [vmem:[%s1 + $0x8] sm:$0xff]
    %v31 = vld [vmem:[%s1 + $0x10] sm:$0xff]
    %v32 = vld [vmem:[%s1 + $0x18] sm:$0xff]
    %v33 = vld [vmem:[%s2] sm:$0x1]
    %v35 = vperm.slane %v33, 0
    %vm37 = vcmask 261120
    %v39 = vsel %vm37, %v27, 0
    %v42 = vsel %vm37, %v28, 0
    %44 = vmatpush.msra.mxu0 0.0
    %45 = vmatpush.msra.mxu0 0.0
    %46 = vmatpush.msra.mxu0 0.0
    %47 = vmatpush.msra.mxu0 0.0
    %48 = vmatpush.msra.mxu0 0.0
    %49 = vmatpush.msra.mxu0 0.0
    %50 = vmatpush.msra.mxu0 0.0
    %51 = vmatpush.msra.mxu0 0.0
    %52 = vmatpush.msra.mxu0 0.0
    %53 = vmatpush.msra.mxu0 0.0
    %54 = vmatpush.msra.mxu0 0.0
    %55 = vmatpush.msra.mxu0 0.0
    %56 = vmatpush.msra.mxu0 %v32
    %57 = vmatpush.msra.mxu0 %v31
    %58 = vmatpush.msra.mxu0 %v30
    %59 = vmatpush.msra.mxu0 %v29
    %60 = vmatmul.f32.gmra.mxu0 %v39
    %v61 = vpop.f32.mrf.mxu0
    %v62 = vadd.f32 %v35, %v61
    %63 = vmatmul.f32.gmra.mxu0 %v42
    %v64 = vpop.f32.mrf.mxu0
    %v65 = vadd.f32 %v35, %v64
    %66 = vdwg.mxu0
    %v67 = vmax.f32 %v62, 0.0
    %v68 = vmax.f32 %v65, 0.0
    %v69 = vld [vmem:[%s3] sm:$0xff]
    %v70 = vld [vmem:[%s3 + $0x8] sm:$0xff]
    %v71 = vld [vmem:[%s3 + $0x10] sm:$0xff]
    %v72 = vld [vmem:[%s3 + $0x18] sm:$0xff]
    %v73 = vld [vmem:[%s3 + $0x20] sm:$0xff]
    %v74 = vld [vmem:[%s3 + $0x28] sm:$0xff]
    %v75 = vld [vmem:[%s3 + $0x30] sm:$0xff]
    %v76 = vld [vmem:[%s3 + $0x38] sm:$0xff]
    %v77 = vld [vmem:[%s4] sm:$0x1]
    %v79 = vperm.slane %v77, 0
    %vm81 = vcmask 523264
    %v83 = vsel %vm81, %v67, 0
    %v86 = vsel %vm81, %v68, 0
    %88 = vmatpush.msra.mxu0 0.0
    %89 = vmatpush.msra.mxu0 0.0
    %90 = vmatpush.msra.mxu0 0.0
    %91 = vmatpush.msra.mxu0 0.0
    %92 = vmatpush.msra.mxu0 0.0
    %93 = vmatpush.msra.mxu0 0.0
    %94 = vmatpush.msra.mxu0 0.0
    %95 = vmatpush.msra.mxu0 0.0
    %96 = vmatpush.msra.mxu0 %v76
    %97 = vmatpush.msra.mxu0 %v75
    %98 = vmatpush.msra.mxu0 %v74
    %99 = vmatpush.msra.mxu0 %v73
    %100 = vmatpush.msra.mxu0 %v72
    %101 = vmatpush.msra.mxu0 %v71
    %102 = vmatpush.msra.mxu0 %v70
    %103 = vmatpush.msra.mxu0 %v69
    %104 = vmatmul.f32.gmra.mxu0 %v83
    %v105 = vpop.f32.mrf.mxu0
    %v106 = vadd.f32 %v79, %v105
    %107 = vmatmul.f32.gmra.mxu0 %v86
    %v108 = vpop.f32.mrf.mxu0
    %v109 = vadd.f32 %v79, %v108
    %110 = vdwg.mxu0
    %v111 = vmax.f32 %v106, 0.0
    %v112 = vmax.f32 %v109, 0.0
    %v113 = vld [vmem:[%s5] sm:$0xff]
    %v114 = vld [vmem:[%s6] sm:$0xff]
    %116 = vset.pattern.permute.xlu0 0
    %117 = vperm.xlu0 %116, %v114
    %v118 = vpop.permute.xlu0 %117
    %v121 = vsel %vm37, %v113, 0
    %v124 = vsel %vm37, %v111, 0
    %v127 = vsel %vm37, %v112, 0
    %129 = vmatpush.xpose.msra.mxu0 0.0
    %130 = vmatpush.xpose.msra.mxu0 0.0
    %131 = vmatpush.xpose.msra.mxu0 0.0
    %132 = vmatpush.xpose.msra.mxu0 0.0
    %133 = vmatpush.xpose.msra.mxu0 0.0
    %134 = vmatpush.xpose.msra.mxu0 0.0
    %135 = vmatpush.xpose.msra.mxu0 0.0
    %136 = vmatpush.xpose.msra.mxu0 0.0
    %137 = vmatpush.xpose.msra.mxu0 0.0
    %138 = vmatpush.xpose.msra.mxu0 0.0
    %139 = vmatpush.xpose.msra.mxu0 0.0
    %140 = vmatpush.xpose.msra.mxu0 0.0
    %141 = vmatpush.xpose.msra.mxu0 0.0
    %142 = vmatpush.xpose.msra.mxu0 0.0
    %143 = vmatpush.xpose.msra.mxu0 %v127
    %144 = vmatpush.xpose.msra.mxu0 %v124
    %145 = vmatmul.f32.gmra.mxu0 %v121
    %v146 = vpop.f32.mrf.mxu0
    %v147 = vadd.f32 %v118, %v146
    %148 = vdwg.mxu0
    %vm149 = vcmask 80896
    %150 = vst.msk [vmem:[#allocation2] sm:$0xff] %vm149, %v147
    // Predicated region
    $region30: #{tpu_custom_call.1} parent=1 // pred_check
      _
    $region31: #{tpu_custom_call.1} parent=1 // pred_check_branch
      %152 = sbr.rel (0) target = $region33
    $region32: #{tpu_custom_call.1} parent=1 // pred_region
      %154 = vsyncadd [#allocation3], 0
      %s156 = sshll.u32 [#allocation2], 4
      %s157 = int_to_ptr.vmem [resolvable:$true] %s156
      %s158 = sshll.u32 %s7, 4
      %s159 = int_to_ptr.hbm [resolvable:$true] %s158
      %161 = dma.vmem_to_hbm [thread:$0]  %s157, 128, %s159, [#allocation3]
    $region33: #{tpu_custom_call.1} parent=1 // pred_fallthru
      _
    // Predicated region
    $region34: #{tpu_custom_call.1} parent=1 // pred_check
      _
    $region35: #{tpu_custom_call.1} parent=1 // pred_check_branch
      %163 = sbr.rel (0) target = $region37
    $region36: #{tpu_custom_call.1} parent=1 // pred_region
      %165 = dma.done [#allocation3], 128
    $region37: #{tpu_custom_call.1} parent=1 // pred_fallthru
      _
    %166 = vsyncpa [#allocation3], 1

</llo_original>
